<compile_context>
chip_gen: v6e
topology: v6e:2x2x1
jax: 0.10.0
libtpu: 0.0.40
codegen_flags: <defaults>
</compile_context>

<pallas_src>
import math
from dataclasses import dataclass
from functools import partial

import jax
import jax.numpy as jnp
from jax import lax
from jax.experimental import pallas as pl
from jax.experimental.pallas import tpu as pltpu

ACT_DTYPE = jnp.bfloat16

# Generation-aware scoped-VMEM limit: ~3/4 of physical (48 MiB on v7x, 96 MiB on
# v5e/v6e); falls back to a universally safe 64 MiB if the query is unavailable.
_VMEM_LIMIT = None


def _vmem_limit():
    global _VMEM_LIMIT
    if _VMEM_LIMIT is None:
        limit = 64 * 1024 * 1024
        try:
            cap = int(pltpu.get_tpu_info().vmem_capacity_bytes)
            limit = min(cap * 3 // 4, 100 * 1024 * 1024)
        except Exception:
            pass
        _VMEM_LIMIT = limit
    return _VMEM_LIMIT


# ----------------------------- config ---------------------------------------
@dataclass
class Config:
    dim: int = 64
    n_layers: int = 2
    n_heads: int = 4
    n_kv_heads: int = 2
    vocab_size: int = 64
    multiple_of: int = 32
    ffn_dim_multiplier: float = None
    norm_eps: float = 1e-5
    rope_theta: float = 500000.0
    max_batch_size: int = 4
    max_seq_len: int = 16


def ffn_hidden_dim(cfg: Config) -> int:
    hidden = 4 * cfg.dim
    hidden = int(2 * hidden / 3)
    if cfg.ffn_dim_multiplier is not None:
        hidden = int(cfg.ffn_dim_multiplier * hidden)
    hidden = cfg.multiple_of * ((hidden + cfg.multiple_of - 1) // cfg.multiple_of)
    return hidden


# ----------------------------- helpers ---------------------------------------
def _pick_tile(dim: int, target: int, align: int) -> int:
    """Largest tile <= target that is a multiple of `align` and divides `dim`;
    falls back to the full dimension (always legal for a BlockSpec)."""
    if dim <= target:
        return dim
    t = (target // align) * align
    while t >= align:
        if dim % t == 0:
            return t
        t -= align
    return dim


def _cparams(*sems):
    return pltpu.CompilerParams(dimension_semantics=sems,
                                vmem_limit_bytes=_vmem_limit())


# ------------------- fused RMSNorm + matmul (QKV / logits) -------------------
def _norm_matmul_kernel(x_ref, g_ref, w_ref, o_ref, xn_ref, *, eps):
    # RMSNorm prologue computed once per row tile (j == 0) and reused across the
    # "arbitrary" N axis.
    @pl.when(pl.program_id(1) == 0)
    def _():
        x = x_ref[...].astype(jnp.float32)
        inv = lax.rsqrt(jnp.mean(x * x, axis=-1, keepdims=True) + eps)
        xn_ref[...] = (x * inv * g_ref[...].astype(jnp.float32)).astype(xn_ref.dtype)

    o_ref[...] = jnp.dot(xn_ref[...], w_ref[...],
                         preferred_element_type=jnp.float32).astype(o_ref.dtype)


def norm_matmul(x2d, gamma, w, eps, *, out_dtype=None, tm=256, tn=512):
    # y = rmsnorm(x) @ w ; x2d: [M, K], w: [K, N].
    M, K = x2d.shape
    N = w.shape[1]
    out_dtype = out_dtype or x2d.dtype
    tm = _pick_tile(M, tm, 16)
    tn = _pick_tile(N, tn, 128)
    return pl.pallas_call(
        partial(_norm_matmul_kernel, eps=eps),
        grid=(M // tm, N // tn),
        in_specs=[
            pl.BlockSpec((tm, K), lambda i, j: (i, 0)),
            pl.BlockSpec((1, K), lambda i, j: (0, 0)),
            pl.BlockSpec((K, tn), lambda i, j: (0, j)),
        ],
        out_specs=pl.BlockSpec((tm, tn), lambda i, j: (i, j)),
        out_shape=jax.ShapeDtypeStruct((M, N), out_dtype),
        scratch_shapes=[pltpu.VMEM((tm, K), w.dtype)],
        compiler_params=_cparams("parallel", "arbitrary"),
    )(x2d, gamma.reshape(1, K), w)


# ------------------- plain matmul with fused residual add --------------------
def _matmul_residual_kernel(x_ref, w_ref, r_ref, o_ref):
    o_ref[...] = (r_ref[...].astype(jnp.float32) +
                  jnp.dot(x_ref[...], w_ref[...],
                          preferred_element_type=jnp.float32)).astype(o_ref.dtype)


def matmul_residual(x2d, w, res2d, *, tm=256, tn=512):
    # out = res + x @ w ; used for the attention output (wo) projection.
    M, K = x2d.shape
    N = w.shape[1]
    tm = _pick_tile(M, tm, 16)
    tn = _pick_tile(N, tn, 128)
    return pl.pallas_call(
        _matmul_residual_kernel,
        grid=(M // tm, N // tn),
        in_specs=[
            pl.BlockSpec((tm, K), lambda i, j: (i, 0)),
            pl.BlockSpec((K, tn), lambda i, j: (0, j)),
            pl.BlockSpec((tm, tn), lambda i, j: (i, j)),
        ],
        out_specs=pl.BlockSpec((tm, tn), lambda i, j: (i, j)),
        out_shape=jax.ShapeDtypeStruct((M, N), res2d.dtype),
        compiler_params=_cparams("parallel", "parallel"),
    )(x2d, w, res2d)


# ------------------- fused RMSNorm + SwiGLU FFN + residual --------------------
def _ffn_kernel(x_ref, g_ref, w1_ref, w3_ref, w2_ref, o_ref, xn_ref, acc_ref, *, eps):
    j = pl.program_id(1)

    @pl.when(j == 0)
    def _():
        x = x_ref[...].astype(jnp.float32)
        inv = lax.rsqrt(jnp.mean(x * x, axis=-1, keepdims=True) + eps)
        xn_ref[...] = (x * inv * g_ref[...].astype(jnp.float32)).astype(xn_ref.dtype)
        acc_ref[...] = jnp.zeros_like(acc_ref)

    xn = xn_ref[...]
    h1 = jnp.dot(xn, w1_ref[...], preferred_element_type=jnp.float32)
    h3 = jnp.dot(xn, w3_ref[...], preferred_element_type=jnp.float32)
    hidden = (h1 * jax.nn.sigmoid(h1)) * h3                      # SiLU in f32
    acc_ref[...] += jnp.dot(hidden.astype(w2_ref.dtype), w2_ref[...],
                            preferred_element_type=jnp.float32)

    @pl.when(j == pl.num_programs(1) - 1)
    def _():
        # residual add fused into the final store.
        o_ref[...] = (x_ref[...].astype(jnp.float32) + acc_ref[...]).astype(o_ref.dtype)


def ffn(x2d, gamma, w1, w3, w2, eps, *, tm=256, th=512):
    # out = x + w2(silu(w1 @ rmsnorm(x)) * (w3 @ rmsnorm(x)))
    M, D = x2d.shape
    HID = w1.shape[1]
    tm = _pick_tile(M, tm, 16)
    # Shrink the hidden tile when double-buffered w1/w3/w2 tiles would not fit the
    # generation's VMEM budget (matters on v7x's 64 MiB physical VMEM).
    while th > 128 and 3 * 2 * (D * th * 2) > 2 * _vmem_limit() // 3:
        th //= 2
    th = _pick_tile(HID, th, 128)
    return pl.pallas_call(
        partial(_ffn_kernel, eps=eps),
        grid=(M // tm, HID // th),
        in_specs=[
            pl.BlockSpec((tm, D), lambda i, j: (i, 0)),
            pl.BlockSpec((1, D), lambda i, j: (0, 0)),
            pl.BlockSpec((D, th), lambda i, j: (0, j)),
            pl.BlockSpec((D, th), lambda i, j: (0, j)),
            pl.BlockSpec((th, D), lambda i, j: (j, 0)),
        ],
        out_specs=pl.BlockSpec((tm, D), lambda i, j: (i, 0)),
        out_shape=jax.ShapeDtypeStruct((M, D), x2d.dtype),
        scratch_shapes=[pltpu.VMEM((tm, D), x2d.dtype),
                        pltpu.VMEM((tm, D), jnp.float32)],
        compiler_params=_cparams("parallel", "arbitrary"),
    )(x2d, gamma.reshape(1, D), w1, w3, w2)


# ------------------- flash attention over the KV cache -----------------------
def _flash_attn_kernel(q_ref, cos_ref, sin_ref, k_ref, v_ref, o_ref,
                       q_sc, m_sc, l_sc, acc_sc, *, scale, start_pos, skv, n_rep):
    t = pl.program_id(2)

    @pl.when(t == 0)
    def _():
        # RoPE (half-split layout) + scale fused into the prologue; done once per
        # (batch, kv-head) block, result cached in VMEM for the whole kv sweep.
        q = q_ref[...].astype(jnp.float32)                  # [S*R, Hd]
        hd2 = q.shape[-1] // 2
        q1, q2 = q[:, :hd2], q[:, hd2:]
        c, sn = cos_ref[...], sin_ref[...]
        q_sc[:, :hd2] = ((q1 * c - q2 * sn) * scale).astype(q_sc.dtype)
        q_sc[:, hd2:] = ((q2 * c + q1 * sn) * scale).astype(q_sc.dtype)
        m_sc[...] = jnp.full_like(m_sc, -jnp.inf)
        l_sc[...] = jnp.zeros_like(l_sc)
        acc_sc[...] = jnp.zeros_like(acc_sc)

    k = k_ref[...]                                           # [tk, Hd] bf16
    v = v_ref[...]                                           # [tk, Hd] bf16

    # scores on the MXU with f32 accumulation; n_rep query heads folded into rows.
    s = lax.dot_general(q_sc[...], k, (((1,), (1,)), ((), ())),
                        preferred_element_type=jnp.float32)  # [S*R, tk]

    # causal + valid-length mask built in-kernel (row = query_pos * n_rep + rep).
    q_pos = start_pos + lax.broadcasted_iota(jnp.int32, s.shape, 0) // n_rep
    k_pos = t * s.shape[1] + lax.broadcasted_iota(jnp.int32, s.shape, 1)
    s = jnp.where((k_pos <= q_pos) & (k_pos < skv), s, -jnp.inf)

    m_prev = m_sc[...]
    m_new = jnp.maximum(m_prev, jnp.max(s, axis=-1, keepdims=True))
    alpha = jnp.exp(m_prev - m_new)
    p = jnp.exp(s - m_new)
    l_sc[...] = alpha * l_sc[...] + jnp.sum(p, axis=-1, keepdims=True)
    acc_sc[...] = alpha * acc_sc[...] + lax.dot_general(
        p.astype(v.dtype), v, (((1,), (0,)), ((), ())),
        preferred_element_type=jnp.float32)
    m_sc[...] = m_new

    @pl.when(t == pl.num_programs(2) - 1)
    def _():
        o_ref[...] = (acc_sc[...] *
                      pl.reciprocal(l_sc[...], approx=True)).astype(o_ref.dtype)


def flash_attention(q, k_cache, v_cache, cos_q, sin_q, *,
                    start_pos, skv, n_rep, scale, kv_tile=1024):
    # q: [B, KV, S*n_rep, Hd]; caches: [Bmax, KV, max_seq, Hd] (head-major).
    # Each K/V tile is streamed once per KV head (GQA resolved by folding n_rep
    # query heads into the row dim of the score matmul).
    B, KV, SR, Hd = q.shape
    max_seq = k_cache.shape[2]
    tk = _pick_tile(max_seq, kv_tile, 16)
    n_kv = pl.cdiv(skv, tk)
    # TODO(synk): pass start_pos/skv via scalar prefetch (static max-tile grid) so
    # decode steps do not recompile; also tile the query axis for very long prefill.
    return pl.pallas_call(
        partial(_flash_attn_kernel, scale=scale, start_pos=start_pos,
                skv=skv, n_rep=n_rep),
        grid=(B, KV, n_kv),
        in_specs=[
            pl.BlockSpec((None, None, SR, Hd), lambda b, h, t: (b, h, 0, 0)),
            pl.BlockSpec((SR, Hd // 2), lambda b, h, t: (0, 0)),
            pl.BlockSpec((SR, Hd // 2), lambda b, h, t: (0, 0)),
            pl.BlockSpec((None, None, tk, Hd), lambda b, h, t: (b, h, t, 0)),
            pl.BlockSpec((None, None, tk, Hd), lambda b, h, t: (b, h, t, 0)),
        ],
        out_specs=pl.BlockSpec((None, None, SR, Hd), lambda b, h, t: (b, h, 0, 0)),
        out_shape=jax.ShapeDtypeStruct((B, KV, SR, Hd), q.dtype),
        scratch_shapes=[pltpu.VMEM((SR, Hd), q.dtype),
                        pltpu.VMEM((SR, 1), jnp.float32),
                        pltpu.VMEM((SR, 1), jnp.float32),
                        pltpu.VMEM((SR, Hd), jnp.float32)],
        compiler_params=_cparams("parallel", "parallel", "arbitrary"),
    )(q, cos_q, sin_q, k_cache, v_cache)


# ------------------- KV cache update (in place via aliasing) -----------------
def _kv_update_kernel(cache_ref, new_ref, o_ref):
    del cache_ref            # aliased with the output; never read (pl.ANY, no DMA).
    o_ref[...] = new_ref[...]


def _kv_update_rope_kernel(cache_ref, new_ref, cos_ref, sin_ref, o_ref):
    del cache_ref
    x = new_ref[...].astype(jnp.float32)                     # [S, Hd]
    hd2 = x.shape[-1] // 2
    x1, x2 = x[:, :hd2], x[:, hd2:]
    c, sn = cos_ref[...], sin_ref[...]
    o_ref[:, :hd2] = (x1 * c - x2 * sn).astype(o_ref.dtype)
    o_ref[:, hd2:] = (x2 * c + x1 * sn).astype(o_ref.dtype)


def _rotate_half_host(x, cos, sin):
    # x: [B, S, KV, Hd]; cos/sin: [S, Hd//2]  (fallback path only).
    hd2 = x.shape[-1] // 2
    xf = x.astype(jnp.float32)
    x1, x2 = xf[..., :hd2], xf[..., hd2:]
    c = cos[None, :, None, :]
    s = sin[None, :, None, :]
    return jnp.concatenate([x1 * c - x2 * s, x2 * c + x1 * s], axis=-1).astype(x.dtype)


def update_kv_cache(cache, new, start_pos, *, cos=None, sin=None):
    # cache: [Bmax, KV, max_seq, Hd] (head-major), new: [B, S, KV, Hd] (projection
    # layout; the seq<->head swap is done by the BlockSpec index maps, not the host).
    # When cos/sin are given, RoPE is fused into the write (K path).
    B, S, KV, Hd = new.shape
    max_seq = cache.shape[2]
    aligned = (start_pos % S == 0) and (max_seq % S == 0) and (S % 8 == 0 or S == max_seq)
    if not aligned:
        # TODO(synk): scalar-prefetch (pl.ds on the seq axis) aliased write for the
        # unaligned single-token decode path; fall back to XLA update for now.
        x = new if cos is None else _rotate_half_host(new, cos, sin)
        return lax.dynamic_update_slice(cache, x.transpose(0, 2, 1, 3),
                                        (0, 0, start_pos, 0))
    blk = start_pos // S
    if cos is not None:
        kernel = _kv_update_rope_kernel
        extra = (cos, sin)
        extra_specs = [pl.BlockSpec((S, Hd // 2), lambda b, k: (0, 0)),
                       pl.BlockSpec((S, Hd // 2), lambda b, k: (0, 0))]
    else:
        kernel = _kv_update_kernel
        extra = ()
        extra_specs = []
    return pl.pallas_call(
        kernel,
        grid=(B, KV),
        in_specs=[
            pl.BlockSpec(memory_space=pl.ANY),                       # aliased, never read
            pl.BlockSpec((None, S, None, Hd), lambda b, k: (b, 0, k, 0)),
            *extra_specs,
        ],
        out_specs=pl.BlockSpec((None, None, S, Hd), lambda b, k: (b, k, blk, 0)),
        out_shape=jax.ShapeDtypeStruct(cache.shape, cache.dtype),
        input_output_aliases={0: 0},
        compiler_params=_cparams("parallel", "parallel"),
    )(cache, new, *extra)


# ----------------------------- RoPE tables ------------------------------------
def precompute_freqs(head_dim, end, theta):
    freqs = 1.0 / (theta ** (jnp.arange(0, head_dim, 2)[: head_dim // 2]
                             .astype(jnp.float32) / head_dim))
    t = jnp.arange(end, dtype=jnp.float32)
    ang = jnp.outer(t, freqs)                  # [end, head_dim//2]
    return jnp.cos(ang), jnp.sin(ang)


# ----------------------------- params / caches --------------------------------
def init_params(key, cfg: Config):
    D, H, KV = cfg.dim, cfg.n_heads, cfg.n_kv_heads
    Hd = D // H
    HID = ffn_hidden_dim(cfg)

    def nrm(k, shape):
        return (0.02 * jax.random.normal(k, shape, dtype=jnp.float32)).astype(ACT_DTYPE)

    keys = jax.random.split(key, 2 + cfg.n_layers)
    params = {
        "tok_emb": nrm(keys[0], (cfg.vocab_size, D)),
        "w_out": nrm(keys[1], (D, cfg.vocab_size)),
        "final_norm": jnp.ones((D,), jnp.float32),
        "layers": [],
    }
    for li in range(cfg.n_layers):
        lk = jax.random.split(keys[2 + li], 5)
        params["layers"].append({
            "attn_norm": jnp.ones((D,), jnp.float32),
            "ffn_norm": jnp.ones((D,), jnp.float32),
            # fused q|k|v projection weight: [D, (H + 2*KV) * Hd].  Q/K head columns
            # follow the half-split RoPE layout (see module docstring).
            "wqkv": nrm(lk[0], (D, (H + 2 * KV) * Hd)),
            "wo": nrm(lk[1], (H * Hd, D)),
            "w1": nrm(lk[2], (D, HID)),
            "w3": nrm(lk[3], (D, HID)),
            "w2": nrm(lk[4], (HID, D)),
        })
    cos, sin = precompute_freqs(Hd, cfg.max_seq_len * 2, cfg.rope_theta)
    params["freqs_cos"] = cos
    params["freqs_sin"] = sin
    return params


def init_caches(cfg: Config):
    Hd = cfg.dim // cfg.n_heads
    shape = (cfg.max_batch_size, cfg.n_kv_heads, cfg.max_seq_len, Hd)   # head-major
    return [(jnp.zeros(shape, ACT_DTYPE), jnp.zeros(shape, ACT_DTYPE))
            for _ in range(cfg.n_layers)]


# ----------------------------- forward ----------------------------------------
def transformer_forward(params, cfg: Config, tokens, start_pos, caches):
    B, S = tokens.shape
    D, H, KV = cfg.dim, cfg.n_heads, cfg.n_kv_heads
    Hd = D // H
    R = H // KV
    Skv = start_pos + S
    scale = 1.0 / math.sqrt(Hd)

    h2d = params["tok_emb"][tokens].reshape(B * S, D)            # bf16 (gather glue)
    cos = params["freqs_cos"][start_pos:start_pos + S]           # [S, Hd//2]
    sin = params["freqs_sin"][start_pos:start_pos + S]
    cos_q = jnp.repeat(cos, R, axis=0)                           # [S*R, Hd//2]
    sin_q = jnp.repeat(sin, R, axis=0)

    new_caches = []
    for li, lp in enumerate(params["layers"]):
        cache_k, cache_v = caches[li]

        # -- fused RMSNorm + QKV projection (one kernel, norm computed once) --
        qkv = norm_matmul(h2d, lp["attn_norm"], lp["wqkv"], cfg.norm_eps)
        nq, nkv = H * Hd, KV * Hd
        # Group the n_rep query heads of each KV head into the row dim.
        # TODO(synk): fold this small Q regroup into the flash BlockSpec as well.
        xq = (qkv[:, :nq].reshape(B, S, KV, R, Hd)
              .transpose(0, 2, 1, 3, 4).reshape(B, KV, S * R, Hd))
        xk = qkv[:, nq:nq + nkv].reshape(B, S, KV, Hd)
        xv = qkv[:, nq + nkv:].reshape(B, S, KV, Hd)

        # -- in-place KV cache write straight from the projection layout;
        #    RoPE for K fused into the write --
        cache_k = update_kv_cache(cache_k, xk, start_pos, cos=cos, sin=sin)
        cache_v = update_kv_cache(cache_v, xv, start_pos)
        new_caches.append((cache_k, cache_v))

        # -- flash attention over the cache (RoPE+scale for Q fused in-kernel) --
        attn = flash_attention(xq, cache_k, cache_v, cos_q, sin_q,
                               start_pos=start_pos, skv=Skv, n_rep=R, scale=scale)
        attn2d = (attn.reshape(B, KV, S, R, Hd)
                  .transpose(0, 2, 1, 3, 4).reshape(B * S, H * Hd))

        # -- wo projection as one big matmul with the residual add fused --
        h2d = matmul_residual(attn2d, lp["wo"], h2d)

        # -- fused RMSNorm + SwiGLU FFN + residual --
        h2d = ffn(h2d, lp["ffn_norm"], lp["w1"], lp["w3"], lp["w2"], cfg.norm_eps)

    # -- fused final RMSNorm + output projection (f32 logits) --
    logits = norm_matmul(h2d, params["final_norm"], params["w_out"],
                         cfg.norm_eps, out_dtype=jnp.float32)
    return logits.reshape(B, S, cfg.vocab_size), new_caches


# ----------------------------- pure-JAX reference ------------------------------
def reference_forward(params, cfg: Config, tokens, start_pos):
    assert start_pos == 0, "reference path assumes a fresh (prefill) forward"
    B, S = tokens.shape
    D, H, KV = cfg.dim, cfg.n_heads, cfg.n_kv_heads
    Hd = D // H
    R = H // KV
    eps = cfg.norm_eps
    f32 = jnp.float32

    def rms(x, g):
        xf = x.astype(f32)
        inv = lax.rsqrt(jnp.mean(xf * xf, axis=-1, keepdims=True) + eps)
        return (xf * inv * g.astype(f32)).astype(x.dtype)

    cos = params["freqs_cos"][start_pos:start_pos + S]
    sin = params["freqs_sin"][start_pos:start_pos + S]

    def rope(x):
        # half-split RoPE (numerically identical to the interleaved Llama layout
        # under a fixed per-head column permutation of the random wq/wk weights).
        hd2 = x.shape[-1] // 2
        xf = x.astype(f32)
        x1, x2 = xf[..., :hd2], xf[..., hd2:]
        c = cos[None, :, None, :]
        s = sin[None, :, None, :]
        return jnp.concatenate([x1 * c - x2 * s, x2 * c + x1 * s], axis=-1).astype(x.dtype)

    h = params["tok_emb"][tokens]                               # [B, S, D] bf16
    row = jnp.arange(S)[:, None]
    col = jnp.arange(S)[None, :]
    mask = jnp.where(col > row, -jnp.inf, 0.0).astype(f32)      # causal

    for lp in params["layers"]:
        xn = rms(h, lp["attn_norm"]).reshape(B * S, D)
        nq, nkv = H * Hd, KV * Hd
        qkv = jnp.dot(xn, lp["wqkv"], preferred_element_type=f32).astype(h.dtype)
        xq = rope(qkv[:, :nq].reshape(B, S, H, Hd))
        xk = rope(qkv[:, nq:nq + nkv].reshape(B, S, KV, Hd))
        xv = qkv[:, nq + nkv:].reshape(B, S, KV, Hd)

        keys = jnp.repeat(xk, R, axis=2)
        vals = jnp.repeat(xv, R, axis=2)
        q = xq.transpose(0, 2, 1, 3)
        k = keys.transpose(0, 2, 1, 3)
        v = vals.transpose(0, 2, 1, 3)

        scores = jnp.einsum("bhqd,bhkd->bhqk", q, k,
                            preferred_element_type=f32) / math.sqrt(Hd)
        scores = scores + mask[None, None]
        p = jax.nn.softmax(scores, axis=-1).astype(h.dtype)
        attn = jnp.einsum("bhqk,bhkd->bhqd", p, v,
                          preferred_element_type=f32).astype(h.dtype)
        attn = attn.transpose(0, 2, 1, 3).reshape(B * S, H * Hd)
        attn_out = jnp.dot(attn, lp["wo"], preferred_element_type=f32).reshape(B, S, D)
        h = (h.astype(f32) + attn_out).astype(h.dtype)

        xn = rms(h, lp["ffn_norm"]).reshape(B * S, D)
        h1 = jnp.dot(xn, lp["w1"], preferred_element_type=f32)
        h3 = jnp.dot(xn, lp["w3"], preferred_element_type=f32)
        hid = ((h1 * jax.nn.sigmoid(h1)) * h3).astype(h.dtype)
        ff = jnp.dot(hid, lp["w2"], preferred_element_type=f32).reshape(B, S, D)
        h = (h.astype(f32) + ff).astype(h.dtype)

    xn = rms(h, params["final_norm"]).reshape(B * S, D)
    logits = jnp.dot(xn, params["w_out"], preferred_element_type=f32)
    return logits.reshape(B, S, cfg.vocab_size).astype(f32)


# ----------------------------- main -------------------------------------------
if __name__ == "__main__":
    cfg = Config()
    key = jax.random.PRNGKey(0)
    pkey, tkey = jax.random.split(key)

    params = init_params(pkey, cfg)
    caches = init_caches(cfg)

    B, S = 2, 8
    tokens = jax.random.randint(tkey, (B, S), 0, cfg.vocab_size, dtype=jnp.int32)

    logits, caches = transformer_forward(params, cfg, tokens, start_pos=0, caches=caches)
    logits = jax.block_until_ready(logits)

    assert logits.shape == (B, S, cfg.vocab_size)
    assert logits.dtype == jnp.float32
    assert bool(jnp.all(jnp.isfinite(logits)))

    ref = reference_forward(params, cfg, tokens, start_pos=0)
    err = float(jnp.max(jnp.abs(logits - ref)))
    assert err < 2e-2, f"Pallas forward mismatch vs pure-JAX reference: max abs err = {err}"

    print("KERNEL_OK")
</pallas_src>

<mosaic_0001>
module attributes {stable_mosaic.version = 11 : i64} {
  func.func @_norm_matmul_kernel(%arg0: i32, %arg1: i32, %arg2: memref<16x64xbf16, #tpu.memory_space<vmem>>, %arg3: memref<1x64xf32, #tpu.memory_space<vmem>>, %arg4: memref<64x128xbf16, #tpu.memory_space<vmem>>, %arg5: memref<16x128xbf16, #tpu.memory_space<vmem>>, %arg6: memref<16x64xbf16, #tpu.memory_space<vmem>>) attributes {dimension_semantics = [#tpu.dimension_semantics<parallel>, #tpu.dimension_semantics<arbitrary>], iteration_bounds = array<i64: 1, 1>, scalar_prefetch = 0 : i64, scratch_operands = 1 : i64, tpu.core_type = #tpu.core_type<tc>, window_params = [{transform_indices = @transform_0, window_bounds = array<i64: 16, 64>}, {pipeline_mode = #tpu.pipeline_mode<synchronous>, transform_indices = @transform_1, window_bounds = array<i64: 1, 64>}, {transform_indices = @transform_2, window_bounds = array<i64: 64, 128>}, {transform_indices = @transform_3, window_bounds = array<i64: 16, 128>}]} {
    %c0_i32 = arith.constant 0 : i32
    %0 = arith.cmpi eq, %arg1, %c0_i32 : i32
    %1 = arith.extui %0 : i1 to i32
    %c0_i32_0 = arith.constant 0 : i32
    %2 = arith.cmpi ne, %1, %c0_i32_0 : i32
    scf.if %2 {
      %c0_6 = arith.constant 0 : index
      %c0_7 = arith.constant 0 : index
      %8 = vector.load %arg2[%c0_6, %c0_7] : memref<16x64xbf16, #tpu.memory_space<vmem>>, vector<16x64xbf16>
      %9 = arith.extf %8 : vector<16x64xbf16> to vector<16x64xf32>
      %10 = arith.mulf %9, %9 : vector<16x64xf32>
      %cst_8 = arith.constant dense<0.000000e+00> : vector<16xf32>
      %11 = vector.multi_reduction <add>, %10, %cst_8 [1] : vector<16x64xf32> to vector<16xf32>
      %12 = vector.shape_cast %11 : vector<16xf32> to vector<16x1xf32>
      %cst_9 = arith.constant 6.400000e+01 : f32
      %13 = vector.broadcast %cst_9 : f32 to vector<16x1xf32>
      %14 = arith.divf %12, %13 : vector<16x1xf32>
      %cst_10 = arith.constant 9.99999974E-6 : f32
      %15 = vector.broadcast %cst_10 : f32 to vector<16x1xf32>
      %16 = arith.addf %14, %15 : vector<16x1xf32>
      %17 = math.rsqrt %16 : vector<16x1xf32>
      %18 = vector.broadcast %17 : vector<16x1xf32> to vector<16x64xf32>
      %19 = arith.mulf %9, %18 : vector<16x64xf32>
      %c0_11 = arith.constant 0 : index
      %c0_12 = arith.constant 0 : index
      %20 = vector.load %arg3[%c0_11, %c0_12] : memref<1x64xf32, #tpu.memory_space<vmem>>, vector<1x64xf32>
      %21 = vector.broadcast %20 : vector<1x64xf32> to vector<16x64xf32>
      %22 = arith.mulf %19, %21 : vector<16x64xf32>
      %23 = arith.truncf %22 : vector<16x64xf32> to vector<16x64xbf16>
      %c0_13 = arith.constant 0 : index
      %c0_14 = arith.constant 0 : index
      %24 = vector.load %arg6[%c0_13, %c0_14] : memref<16x64xbf16, #tpu.memory_space<vmem>>, vector<16x64xbf16>
      tpu.vector_store %arg6[%c0_13, %c0_14], %23 {strides = array<i32>} : memref<16x64xbf16, #tpu.memory_space<vmem>>, vector<16x64xbf16>,
    } else {
    }
    %c0 = arith.constant 0 : index
    %c0_1 = arith.constant 0 : index
    %3 = vector.load %arg6[%c0, %c0_1] : memref<16x64xbf16, #tpu.memory_space<vmem>>, vector<16x64xbf16>
    %c0_2 = arith.constant 0 : index
    %c0_3 = arith.constant 0 : index
    %4 = vector.load %arg4[%c0_2, %c0_3] : memref<64x128xbf16, #tpu.memory_space<vmem>>, vector<64x128xbf16>
    %cst = arith.constant dense<0.000000e+00> : vector<16x128xf32>
    %5 = tpu.matmul %3, %4, %cst {dimension_numbers = #tpu.dot_dimension_numbers<[1], [0], [0], [1], [0, 0, 1, 1], [], []>} : vector<16x64xbf16>, vector<64x128xbf16>, vector<16x128xf32> -> vector<16x128xf32>
    %6 = arith.truncf %5 : vector<16x128xf32> to vector<16x128xbf16>
    %c0_4 = arith.constant 0 : index
    %c0_5 = arith.constant 0 : index
    %7 = vector.load %arg5[%c0_4, %c0_5] : memref<16x128xbf16, #tpu.memory_space<vmem>>, vector<16x128xbf16>
    tpu.vector_store %arg5[%c0_4, %c0_5], %6 {strides = array<i32>} : memref<16x128xbf16, #tpu.memory_space<vmem>>, vector<16x128xbf16>,
    return
  }
  func.func @transform_0(%arg0: i32, %arg1: i32) -> (i32, i32) {
    %c0_i32 = arith.constant 0 : i32
    %c0_i32_0 = arith.constant 0 : i32
    return %arg0, %c0_i32 : i32, i32
  }
  func.func @transform_1(%arg0: i32, %arg1: i32) -> (i32, i32) {
    %c0_i32 = arith.constant 0 : i32
    %c0_i32_0 = arith.constant 0 : i32
    %c0_i32_1 = arith.constant 0 : i32
    return %c0_i32, %c0_i32_0 : i32, i32
  }
  func.func @transform_2(%arg0: i32, %arg1: i32) -> (i32, i32) {
    %c0_i32 = arith.constant 0 : i32
    %c0_i32_0 = arith.constant 0 : i32
    return %c0_i32, %arg1 : i32, i32
  }
  func.func @transform_3(%arg0: i32, %arg1: i32) -> (i32, i32) {
    %c0_i32 = arith.constant 0 : i32
    return %arg0, %arg1 : i32, i32
  }
}

</mosaic_0001>

<llo_original>
// kernel: tpu_custom_call.1
$region0: #{tpu_custom_call.1}
  #allocation0 [shape = 'u32[]', space=smem, size = 0x4, offset = 0x4, fixed_abs, tag = 'smem constant byte address 0x4 - core index']
  #allocation1 [shape = 'u32[144,128]{1,0:T(1,128)}', space=vmem, size = 0x12000, scoped, tag = 'internal scratch']
  #allocation2 [shape = 'bf16[16,64]{1,0:T(8,128)(2,1)}', space=vmem, size = 0x1000, scoped, tag = 'scratch operand']
  %s0 = inlined_call_operand.hbm [shape: bf16[16,64], index: 0, kind: input, shape index: {}]
  %s1 = inlined_call_operand.vmem [shape: f32[1,64], index: 1, kind: input, shape index: {}]
  %s2 = inlined_call_operand.hbm [shape: bf16[64,128], index: 2, kind: input, shape index: {}]
  %s3 = inlined_call_operand.hbm [shape: bf16[16,128], index: 3, kind: output, shape index: {}]
  %s4 = sld [smem:[#allocation0]]
  $region34: #{tpu_custom_call.1} parent=0
    _
  %s6 = ssub.s32 1, %s4
  %s7 = scalar_select 0, %s6, %s4
  $region1: #{tpu_custom_call.1} parent=0
    #allocation3 [shape = 'u8[4096]{0}', space=vmem, size = 0x1000, scoped, tag = 'input window, operand 0, single buffered']
    #allocation4 [shape = 's32[1]{0}', space=sflag, size = 0x4, scoped, tag = 'scoped memory for tpu_custom_call.1']
    #allocation5 [shape = 's32[1]{0}', space=sflag, size = 0x4, scoped, tag = 'scoped memory for tpu_custom_call.1']
    #allocation6 [shape = 'u8[16384]{0}', space=vmem, size = 0x4000, scoped, tag = 'input window, operand 2, single buffered']
    #allocation7 [shape = 's32[1]{0}', space=sflag, size = 0x4, scoped, tag = 'scoped memory for tpu_custom_call.1']
    #allocation8 [shape = 'u8[4096]{0}', space=vmem, size = 0x1000, scoped, tag = 'output window, operand 0, single buffered']
    %8 = vsyncpa [#allocation4], 0
    %9 = vsyncpa [#allocation7], 0
    %10 = vsyncpa [#allocation5], 0
    // Predicated region
    $region2: #{tpu_custom_call.1} parent=1 // pred_check
      _
    $region3: #{tpu_custom_call.1} parent=1 // pred_check_branch
      %12 = sbr.rel (0) target = $region5
    $region4: #{tpu_custom_call.1} parent=1 // pred_region
      %s14 = ssub.s32 128, 128
      %15 = vsyncadd [#allocation4], %s14
      %s16 = sshll.u32 [#allocation3], 4
      %s17 = int_to_ptr.vmem [resolvable:$true] %s16
      %22 = dma.hbm_to_vmem [thread:$0]  %s0, 128, %s17, [#allocation4], 64, 64, 4
    $region5: #{tpu_custom_call.1} parent=1 // pred_fallthru
      _
    // Predicated region
    $region6: #{tpu_custom_call.1} parent=1 // pred_check
      _
    $region7: #{tpu_custom_call.1} parent=1 // pred_check_branch
      %24 = sbr.rel (0) target = $region9
    $region8: #{tpu_custom_call.1} parent=1 // pred_region
      _
    $region9: #{tpu_custom_call.1} parent=1 // pred_fallthru
      _
    // Predicated region
    $region10: #{tpu_custom_call.1} parent=1 // pred_check
      _
    $region11: #{tpu_custom_call.1} parent=1 // pred_check_branch
      %26 = sbr.rel (0) target = $region13
    $region12: #{tpu_custom_call.1} parent=1 // pred_region
      %s28 = ssub.s32 512, 512
      %29 = vsyncadd [#allocation7], %s28
      %s30 = sshll.u32 [#allocation6], 4
      %s31 = int_to_ptr.vmem [resolvable:$true] %s30
      %36 = dma.hbm_to_vmem [thread:$0]  %s2, 512, %s31, [#allocation7], 64, 64, 4
    $region13: #{tpu_custom_call.1} parent=1 // pred_fallthru
      _
    // Predicated region
    $region14: #{tpu_custom_call.1} parent=1 // pred_check
      _
    $region15: #{tpu_custom_call.1} parent=1 // pred_check_branch
      %38 = sbr.rel (0) target = $region17
    $region16: #{tpu_custom_call.1} parent=1 // pred_region
      %39 = dma.done [#allocation4], 128
    $region17: #{tpu_custom_call.1} parent=1 // pred_fallthru
      _
    // Predicated region
    $region18: #{tpu_custom_call.1} parent=1 // pred_check
      _
    $region19: #{tpu_custom_call.1} parent=1 // pred_check_branch
      %41 = sbr.rel (0) target = $region21
    $region20: #{tpu_custom_call.1} parent=1 // pred_region
      %42 = dma.done [#allocation7], 512
    $region21: #{tpu_custom_call.1} parent=1 // pred_fallthru
      _
    %p44 = scmp.eq.s32.totalorder 0, 0
    // Predicated region
    $region22: #{tpu_custom_call.1} parent=1 // pred_check
      %p45 = pneg %p44
    $region23: #{tpu_custom_call.1} parent=1 // pred_check_branch
      %47 = sbr.rel (%p45) target = $region25
    $region24: #{tpu_custom_call.1} parent=1 // pred_region
      %v48 = vld [vmem:[#allocation3] sm:$0xf]
      %v49 = vld [vmem:[#allocation3 + $0x4] sm:$0xf]
      %v50 = vunpack.c.l.bf16 %v48
      %v51 = vunpack.c.l.bf16 %v49
      %v52 = vmul.f32 %v50, %v50
      %v53 = vmul.f32 %v51, %v51
      %vm54 = vcmask 523264
      %v55 = vsel %vm54, %v52, 0.0
      %56 = vadd.xlane.f32.xlu0 %v55
      %v57 = vpop.xlane.xlu0 %56
      %v58 = vsel %vm54, %v53, 0.0
      %59 = vadd.xlane.f32.xlu0 %v58
      %v60 = vpop.xlane.xlu0 %59
      %v61 = vrcp.pop 64.0
      %v62 = vmul.f32 %v57, %v61
      %v63 = vmul.f32 %v60, %v61
      %v64 = vadd.f32 %v62, 1e-05
      %v65 = vadd.f32 %v63, 1e-05
      %v66 = vrsqrt.pop %v64
      %v67 = vrsqrt.pop %v65
      %v68 = vmul.f32 %v50, %v66
      %v69 = vmul.f32 %v51, %v67
      %v70 = vld [vmem:[%s1] sm:$0x1]
      %v72 = vlaneseq
      %v73 = vshrl.u32 %v72, 7
      %v74 = vsub.s32 0, %v73
      %v75 = vrot.slane %v70, %v74
      %v77 = vmul.f32 %v68, %v75
      %v78 = vmul.f32 %v69, %v75
      %v79 = vpack.c.bf16 %v78, %v77
      %v81 = vunpack.c.l.b16 %v79
      %v82 = vunpack.c.h.b16 %v79
      %v83 = vpack.c.b16 %v81, %v81
      %v84 = vpack.c.b16 %v82, %v82
      %vm87 = vcmask 519168
      %88 = vst.msk [vmem:[#allocation2] sm:$0xf] %vm87, %v83
      %89 = vst.msk [vmem:[#allocation2 + $0x4] sm:$0xf] %vm87, %v84
    $region25: #{tpu_custom_call.1} parent=1 // pred_fallthru
      _
    %v90 = vld [vmem:[#allocation2] sm:$0xf]
    %v91 = vld [vmem:[#allocation2 + $0x4] sm:$0xf]
    %v92 = vld [vmem:[#allocation6] sm:$0xf]
    %v93 = vld [vmem:[#allocation6 + $0x4] sm:$0xf]
    %v94 = vld [vmem:[#allocation6 + $0x8] sm:$0xf]
    %v95 = vld [vmem:[#allocation6 + $0xc] sm:$0xf]
    %v96 = vld [vmem:[#allocation6 + $0x10] sm:$0xf]
    %v97 = vld [vmem:[#allocation6 + $0x14] sm:$0xf]
    %v98 = vld [vmem:[#allocation6 + $0x18] sm:$0xf]
    %v99 = vld [vmem:[#allocation6 + $0x1c] sm:$0xf]
    %v102 = vunpack.c.l.b16 %v90
    %v103 = vunpack.c.l.b16 %v91
    %v104 = vpack.c.b16 %v103, %v102
    %v113 = vunpack.c.l.b16 %v92
    %v114 = vunpack.c.l.b16 %v93
    %v115 = vunpack.c.l.b16 %v94
    %v116 = vunpack.c.l.b16 %v95
    %v117 = vunpack.c.l.b16 %v96
    %v118 = vunpack.c.l.b16 %v97
    %v119 = vunpack.c.l.b16 %v98
    %v120 = vunpack.c.l.b16 %v99
    %v121 = vpack.c.b16 %v114, %v113
    %v122 = vpack.c.b16 %v116, %v115
    %v123 = vpack.c.b16 %v118, %v117
    %v124 = vpack.c.b16 %v120, %v119
    %vm129 = vcmask 523264
    %v131 = vsel %vm129, %v104, 0
    %133 = vmatprep.subr.bf16.mxu0 0
    %134 = vmatpush1.bf16.msra.mxu0 0
    %135 = vmatprep.subr.bf16.mxu0 0
    %136 = vmatpush1.bf16.msra.mxu0 0
    %137 = vmatprep.subr.bf16.mxu0 0
    %138 = vmatpush1.bf16.msra.mxu0 0
    %139 = vmatprep.subr.bf16.mxu0 0
    %140 = vmatpush1.bf16.msra.mxu0 0
    %141 = vmatprep.subr.bf16.mxu0 0
    %142 = vmatpush1.bf16.msra.mxu0 %v124
    %143 = vmatprep.subr.bf16.mxu0 0
    %144 = vmatpush1.bf16.msra.mxu0 %v123
    %145 = vmatprep.subr.bf16.mxu0 0
    %146 = vmatpush1.bf16.msra.mxu0 %v122
    %147 = vmatprep.subr.bf16.mxu0 0
    %148 = vmatpush1.bf16.msra.mxu0 %v121
    %149 = vmatprep.subr.bf16.mxu0 0
    %150 = vmatpush2.bf16.msra.mxu0 0
    %151 = vmatprep.subr.bf16.mxu0 0
    %152 = vmatpush2.bf16.msra.mxu0 0
    %153 = vmatprep.subr.bf16.mxu0 0
    %154 = vmatpush2.bf16.msra.mxu0 0
    %155 = vmatprep.subr.bf16.mxu0 0
    %156 = vmatpush2.bf16.msra.mxu0 0
    %157 = vmatprep.subr.bf16.mxu0 0
    %158 = vmatpush2.bf16.msra.mxu0 0
    %159 = vmatprep.subr.bf16.mxu0 0
    %160 = vmatpush2.bf16.msra.mxu0 0
    %161 = vmatprep.subr.bf16.mxu0 0
    %162 = vmatpush2.bf16.msra.mxu0 0
    %163 = vmatprep.subr.bf16.mxu0 0
    %164 = vmatpush2.bf16.msra.mxu0 0
    %165 = vmatprep.mubr.bf16.mxu0 0
    %166 = vmatmul.mubr.bf16.gmra.mxu0 %v131
    %v167 = vpop.f32.mrf.mxu0
    %v168 = vadd.f32 0.0, %v167
    %v169 = vpop.f32.mrf.mxu0
    %v170 = vpop.f32.mrf.mxu0
    %v171 = vadd.f32 0.0, %v170
    %v172 = vpop.f32.mrf.mxu0
    %173 = vdwg.mxu0
    %v174 = vpack.c.bf16 %v171, %v168
    %v176 = vunpack.c.l.b16 %v174
    %v177 = vunpack.c.h.b16 %v174
    %v178 = vpack.c.b16 %v176, %v176
    %v179 = vpack.c.b16 %v177, %v177
    %182 = vst [vmem:[#allocation8] sm:$0xf] %v178
    %183 = vst [vmem:[#allocation8 + $0x4] sm:$0xf] %v179
    // Predicated region
    $region26: #{tpu_custom_call.1} parent=1 // pred_check
      _
    $region27: #{tpu_custom_call.1} parent=1 // pred_check_branch
      %185 = sbr.rel (0) target = $region29
    $region28: #{tpu_custom_call.1} parent=1 // pred_region
      %s187 = ssub.s32 128, 128
      %188 = vsyncadd [#allocation5], %s187
      %s189 = sshll.u32 [#allocation8], 4
      %s190 = int_to_ptr.vmem [resolvable:$true] %s189
      %195 = dma.vmem_to_hbm [thread:$0]  %s190, 128, %s3, [#allocation5], 64, 64, 4
    $region29: #{tpu_custom_call.1} parent=1 // pred_fallthru
      _
    // Predicated region
    $region30: #{tpu_custom_call.1} parent=1 // pred_check
      _
    $region31: #{tpu_custom_call.1} parent=1 // pred_check_branch
      %197 = sbr.rel (0) target = $region33
    $region32: #{tpu_custom_call.1} parent=1 // pred_region
      %198 = dma.done [#allocation5], 128
    $region33: #{tpu_custom_call.1} parent=1 // pred_fallthru
      _
    %199 = vsyncpa [#allocation4], 1
    %200 = vsyncpa [#allocation7], 1
    %201 = vsyncpa [#allocation5], 1

</llo_original>
